<compile_context>
chip_gen: v7x
topology: tpu7x:2x2x1
jax: 0.10.0
libtpu: 0.0.40
codegen_flags: <defaults>
</compile_context>

<pallas_src>
import functools
import jax
import jax.numpy as jnp
from jax.experimental import pallas as pl
from jax.experimental.pallas import tpu as pltpu

TIMESTEPS = 500
NUM_CLASSES = 20   # x_classes=20 (amino acids)
HIDDEN = 32


def _kcat_forward_kernel(aux_ref,       # (T, 4+C) f32 [alpha_bar, t_norm, class, ce_w, gumbel...]
                         w1_ref,        # (C+2, H) bf16  stacked [w1; b1; wt]
                         w2_ref,        # (H, C)   bf16
                         b2_ref,        # (1, C)   f32
                         pred_ref,      # (T, C)   f32 out: model logits (pred_X)
                         loss_ref):     # (1, 1)   f32 out: accumulated mean CE loss
    i = pl.program_id(0)

    @pl.when(i == 0)
    def _init():
        loss_ref[...] = jnp.zeros_like(loss_ref)

    C = pred_ref.shape[-1]
    aux = aux_ref[...]
    a = aux[:, 0:1]                        # alpha_bar gathered per node (Qtb[batch])
    t = aux[:, 1:2]                        # normalized timestep per node
    cls = aux[:, 2:3].astype(jnp.int32)    # x_0 class index per node
    ce_w = aux[:, 3:4]                     # 1/N for real nodes, 0 for padding rows
    g = aux[:, 4:4 + C]                    # Gumbel(0,1) noise for the multinomial draw

    T = aux.shape[0]
    col_c = jax.lax.broadcasted_iota(jnp.int32, (T, C), 1)

    # ---- apply_noise: prob_X = Qtb[batch] @ x with Qtb = a*I + (1-a)/C * 11^T.
    # x is one-hot -> row-sum is exactly 1, so prob_X = a*onehot + (1-a)/C.
    x_onehot = (col_c == cls).astype(jnp.float32)
    prob_X = a * x_onehot + (1.0 - a) * (1.0 / C)

    # ---- multinomial(1) via Gumbel-max.
    logits_sample = jnp.log(jnp.maximum(prob_X, 1e-30)) + g
    mx = jnp.max(logits_sample, axis=-1, keepdims=True)
    X_t = jnp.min(jnp.where(logits_sample == mx, col_c, C), axis=-1, keepdims=True)

    # ---- model(noise_data, t): time conditioning + bias folded into matmul 1.
    # aug = [one_hot(X_t), 1, t] @ [w1; b1; wt] == one_hot@w1 + b1 + t*wt
    col_a = jax.lax.broadcasted_iota(jnp.int32, (T, C + 2), 1)
    aug = ((col_a == X_t).astype(jnp.float32)
           + (col_a == C).astype(jnp.float32)
           + (col_a == C + 1).astype(jnp.float32) * t).astype(jnp.bfloat16)
    h = jnp.dot(aug, w1_ref[...], preferred_element_type=jnp.float32)
    h = jnp.maximum(h, 0.0)
    pred = jnp.dot(h.astype(jnp.bfloat16), w2_ref[...],
                   preferred_element_type=jnp.float32) + b2_ref[...]
    pred_ref[...] = pred

    # ---- F.cross_entropy(pred, target=x_0 one-hot, reduction='mean'), accumulated.
    pm = jnp.max(pred, axis=-1, keepdims=True)
    lse = pm + jnp.log(jnp.sum(jnp.exp(pred - pm), axis=-1, keepdims=True))
    tgt = jnp.sum(jnp.where(col_c == cls, pred, 0.0), axis=-1, keepdims=True)
    per_node = (lse - tgt) * ce_w                       # already weighted by 1/N
    loss_ref[...] += jnp.sum(per_node, axis=0, keepdims=True)


def _cosine_alpha_bar(t_norm, s=0.008):
    # PredefinedNoiseScheduleDiscrete(noise_schedule='cosine').get_alpha_bar
    f = jnp.cos((t_norm + s) / (1.0 + s) * jnp.pi * 0.5) ** 2
    f0 = jnp.cos(jnp.asarray(s / (1.0 + s), jnp.float32) * jnp.pi * 0.5) ** 2
    return jnp.clip(f / f0, 0.0, 1.0)


def _pick_tile(n):
    if n >= 1024:
        return 1024
    return max(8, ((n + 7) // 8) * 8)


@functools.partial(jax.jit, static_argnames=("tile_n",))
def kcat_diffuser_forward(x_classes, batch, t_int, key, params, tile_n=None):
    """KcatDiffuser.forward (logit=True): returns (loss, pred_X).

    x_classes : (N,) int32  amino-acid class index per node (== argmax(data.x))
    batch     : (N,) int32  graph id per node (data.batch)
    t_int     : (B, 1) f32  per-graph timestep ~ U{0..T}
    key       : PRNG key    randomness for the multinomial (Gumbel-max) draw
    """
    N = x_classes.shape[0]
    C = NUM_CLASSES
    H = params["w1"].shape[1]
    if tile_n is None:
        tile_n = _pick_tile(N)
    n_pad = ((N + tile_n - 1) // tile_n) * tile_n

    t_float = t_int.astype(jnp.float32) / TIMESTEPS       # (B, 1)
    alpha_bar = _cosine_alpha_bar(t_float)                # (B, 1)

    # Single packed per-node stream: [alpha_bar, t_norm, class, ce_weight, gumbel...].
    aux4 = jnp.concatenate(
        [alpha_bar[batch],                                # (N, 1)  Qtb[data.batch]
         t_float[batch],                                  # (N, 1)
         x_classes.astype(jnp.float32)[:, None],          # (N, 1)
         jnp.full((N, 1), 1.0 / N, jnp.float32)],         # (N, 1)  CE mean weight
        axis=1)
    aux4 = jnp.pad(aux4, ((0, n_pad - N), (0, 0)))        # pad rows get weight 0
    gumbel = jax.random.gumbel(key, (n_pad, C), jnp.float32)
    aux = jnp.concatenate([aux4, gumbel], axis=1)         # (n_pad, 4 + C)

    # Fold [w1; b1; wt] into one bf16 (C+2, H) weight; bf16 w2; f32 b2.
    w1aug = jnp.concatenate([params["w1"], params["b1"], params["wt"]],
                            axis=0).astype(jnp.bfloat16)
    w2 = params["w2"].astype(jnp.bfloat16)
    b2 = params["b2"].astype(jnp.float32)

    pred_pad, loss = pl.pallas_call(
        _kcat_forward_kernel,
        out_shape=(jax.ShapeDtypeStruct((n_pad, C), jnp.float32),
                   jax.ShapeDtypeStruct((1, 1), jnp.float32)),
        grid_spec=pltpu.PrefetchScalarGridSpec(
            num_scalar_prefetch=0,
            grid=(n_pad // tile_n,),
            in_specs=[
                pl.BlockSpec((tile_n, 4 + C), lambda i: (i, 0)),  # per-node aux+gumbel
                pl.BlockSpec((C + 2, H), lambda i: (0, 0)),       # w1aug (resident)
                pl.BlockSpec((H, C), lambda i: (0, 0)),           # w2 (resident)
                pl.BlockSpec((1, C), lambda i: (0, 0)),           # b2 (resident)
            ],
            out_specs=(
                pl.BlockSpec((tile_n, C), lambda i: (i, 0)),      # pred logits
                pl.BlockSpec((1, 1), lambda i: (0, 0)),           # mean-CE accumulator
            ),
        ),
        compiler_params=pltpu.CompilerParams(
            # loss block is a grid-wide accumulator -> node axis must be "arbitrary"
            dimension_semantics=("arbitrary",),
            vmem_limit_bytes=32 * 1024 * 1024,
        ),
    )(aux, w1aug, w2, b2)

    return loss[0, 0], pred_pad[:N]


def make_params(key, c=NUM_CLASSES, h=HIDDEN):
    k1, k2, k3, k4, k5 = jax.random.split(key, 5)
    return {
        "w1": jax.random.normal(k1, (c, h), jnp.float32) * 0.1,
        "b1": jax.random.normal(k2, (1, h), jnp.float32) * 0.01,
        "wt": jax.random.normal(k3, (1, h), jnp.float32) * 0.1,
        "w2": jax.random.normal(k4, (h, c), jnp.float32) * 0.1,
        "b2": jax.random.normal(k5, (1, c), jnp.float32) * 0.01,
    }


if __name__ == "__main__":
    key = jax.random.PRNGKey(0)
    k_params, k_x, k_t, k_noise = jax.random.split(key, 4)

    # Synthetic graph batch: B=2 graphs x 64 nodes each, 20 amino-acid classes.
    B, NODES_PER_GRAPH = 2, 64
    N = B * NODES_PER_GRAPH
    C = NUM_CLASSES

    # data.x == one_hot(x_classes); the kernel consumes the class indices directly.
    x_classes = jax.random.randint(k_x, (N,), 0, C).astype(jnp.int32)
    batch = jnp.repeat(jnp.arange(B, dtype=jnp.int32), NODES_PER_GRAPH)
    # t_int ~ randint(0, timesteps+1) per graph, shape (B, 1) (as in forward())
    t_int = jax.random.randint(k_t, (B, 1), 0, TIMESTEPS + 1).astype(jnp.float32)

    params = make_params(k_params)

    # tile_n=64 -> grid of 2 node tiles, exercising pipelining + loss accumulation.
    loss, pred = kcat_diffuser_forward(x_classes, batch, t_int, k_noise, params,
                                       tile_n=64)
    jax.block_until_ready((loss, pred))

    assert pred.shape == (N, C)
    assert bool(jnp.isfinite(loss)) and bool(jnp.all(jnp.isfinite(pred)))
    print("KERNEL_OK")
</pallas_src>

<mosaic_0001>
module attributes {stable_mosaic.version = 11 : i64} {
  func.func @_kcat_forward_kernel(%arg0: i32, %arg1: memref<64x24xf32, #tpu.memory_space<vmem>>, %arg2: memref<22x32xbf16, #tpu.memory_space<vmem>>, %arg3: memref<32x20xbf16, #tpu.memory_space<vmem>>, %arg4: memref<1x20xf32, #tpu.memory_space<vmem>>, %arg5: memref<64x20xf32, #tpu.memory_space<vmem>>, %arg6: memref<1x1xf32, #tpu.memory_space<vmem>>) attributes {dimension_semantics = [#tpu.dimension_semantics<arbitrary>], iteration_bounds = array<i64: 2>, scalar_prefetch = 0 : i64, scratch_operands = 0 : i64, tpu.core_type = #tpu.core_type<tc>, window_params = [{transform_indices = @transform_0, window_bounds = array<i64: 64, 24>}, {pipeline_mode = #tpu.pipeline_mode<synchronous>, transform_indices = @transform_1, window_bounds = array<i64: 22, 32>}, {pipeline_mode = #tpu.pipeline_mode<synchronous>, transform_indices = @transform_2, window_bounds = array<i64: 32, 20>}, {pipeline_mode = #tpu.pipeline_mode<synchronous>, transform_indices = @transform_3, window_bounds = array<i64: 1, 20>}, {transform_indices = @transform_4, window_bounds = array<i64: 64, 20>}, {pipeline_mode = #tpu.pipeline_mode<synchronous>, transform_indices = @transform_5, window_bounds = array<i64: 1, 1>}]} {
    %c0_i32 = arith.constant 0 : i32
    %0 = arith.cmpi eq, %arg0, %c0_i32 : i32
    %1 = arith.extui %0 : i1 to i32
    %c0_i32_0 = arith.constant 0 : i32
    %2 = arith.cmpi ne, %1, %c0_i32_0 : i32
    scf.if %2 {
      %cst_27 = arith.constant 0.000000e+00 : f32
      %86 = vector.broadcast %cst_27 : f32 to vector<1x1xf32>
      %c0_28 = arith.constant 0 : index
      %c0_29 = arith.constant 0 : index
      %87 = vector.load %arg6[%c0_28, %c0_29] : memref<1x1xf32, #tpu.memory_space<vmem>>, vector<1x1xf32>
      tpu.vector_store %arg6[%c0_28, %c0_29], %86 {strides = array<i32>} : memref<1x1xf32, #tpu.memory_space<vmem>>, vector<1x1xf32>,
    } else {
    }
    %c0 = arith.constant 0 : index
    %c0_1 = arith.constant 0 : index
    %3 = vector.load %arg1[%c0, %c0_1] : memref<64x24xf32, #tpu.memory_space<vmem>>, vector<64x24xf32>
    %4 = vector.extract_strided_slice %3 {offsets = [0, 0], sizes = [64, 1], strides = [1, 1]} : vector<64x24xf32> to vector<64x1xf32>
    %5 = vector.extract_strided_slice %3 {offsets = [0, 1], sizes = [64, 1], strides = [1, 1]} : vector<64x24xf32> to vector<64x1xf32>
    %6 = vector.extract_strided_slice %3 {offsets = [0, 2], sizes = [64, 1], strides = [1, 1]} : vector<64x24xf32> to vector<64x1xf32>
    %7 = arith.fptosi %6 : vector<64x1xf32> to vector<64x1xi32>
    %8 = vector.extract_strided_slice %3 {offsets = [0, 3], sizes = [64, 1], strides = [1, 1]} : vector<64x24xf32> to vector<64x1xf32>
    %9 = vector.extract_strided_slice %3 {offsets = [0, 4], sizes = [64, 20], strides = [1, 1]} : vector<64x24xf32> to vector<64x20xf32>
    %10 = tpu.iota {dimensions = array<i32: 1>} : vector<64x20xi32>
    %11 = vector.broadcast %7 : vector<64x1xi32> to vector<64x20xi32>
    %12 = arith.cmpi eq, %10, %11 : vector<64x20xi32>
    %13 = arith.extui %12 : vector<64x20xi1> to vector<64x20xi32>
    %14 = arith.sitofp %13 : vector<64x20xi32> to vector<64x20xf32>
    %15 = vector.broadcast %4 : vector<64x1xf32> to vector<64x20xf32>
    %16 = arith.mulf %15, %14 : vector<64x20xf32>
    %cst = arith.constant 1.000000e+00 : f32
    %17 = vector.broadcast %cst : f32 to vector<64x1xf32>
    %18 = arith.subf %17, %4 : vector<64x1xf32>
    %cst_2 = arith.constant 5.000000e-02 : f32
    %19 = vector.broadcast %cst_2 : f32 to vector<64x1xf32>
    %20 = arith.mulf %18, %19 : vector<64x1xf32>
    %21 = vector.broadcast %20 : vector<64x1xf32> to vector<64x20xf32>
    %22 = arith.addf %16, %21 : vector<64x20xf32>
    %cst_3 = arith.constant 1.000000e-30 : f32
    %23 = vector.broadcast %cst_3 : f32 to vector<64x20xf32>
    %24 = arith.maximumf %22, %23 : vector<64x20xf32>
    %25 = math.log %24 : vector<64x20xf32>
    %26 = arith.addf %25, %9 : vector<64x20xf32>
    %cst_4 = arith.constant dense<0xFF800000> : vector<64xf32>
    %27 = vector.multi_reduction <maximumf>, %26, %cst_4 [1] : vector<64x20xf32> to vector<64xf32>
    %28 = vector.shape_cast %27 : vector<64xf32> to vector<64x1xf32>
    %29 = vector.broadcast %28 : vector<64x1xf32> to vector<64x20xf32>
    %30 = arith.cmpf oeq, %26, %29 : vector<64x20xf32>
    %c20_i32 = arith.constant 20 : i32
    %31 = vector.broadcast %c20_i32 : i32 to vector<64x20xi32>
    %32 = arith.select %30, %10, %31 : vector<64x20xi1>, vector<64x20xi32>
    %cst_5 = arith.constant dense<2147483647> : vector<64xi32>
    %33 = vector.multi_reduction <minsi>, %32, %cst_5 [1] : vector<64x20xi32> to vector<64xi32>
    %34 = vector.shape_cast %33 : vector<64xi32> to vector<64x1xi32>
    %35 = tpu.iota {dimensions = array<i32: 1>} : vector<64x22xi32>
    %36 = vector.broadcast %34 : vector<64x1xi32> to vector<64x22xi32>
    %37 = arith.cmpi eq, %35, %36 : vector<64x22xi32>
    %38 = arith.extui %37 : vector<64x22xi1> to vector<64x22xi32>
    %39 = arith.sitofp %38 : vector<64x22xi32> to vector<64x22xf32>
    %c20_i32_6 = arith.constant 20 : i32
    %40 = vector.broadcast %c20_i32_6 : i32 to vector<64x22xi32>
    %41 = arith.cmpi eq, %35, %40 : vector<64x22xi32>
    %42 = arith.extui %41 : vector<64x22xi1> to vector<64x22xi32>
    %43 = arith.sitofp %42 : vector<64x22xi32> to vector<64x22xf32>
    %44 = arith.addf %39, %43 : vector<64x22xf32>
    %c21_i32 = arith.constant 21 : i32
    %45 = vector.broadcast %c21_i32 : i32 to vector<64x22xi32>
    %46 = arith.cmpi eq, %35, %45 : vector<64x22xi32>
    %47 = arith.extui %46 : vector<64x22xi1> to vector<64x22xi32>
    %48 = arith.sitofp %47 : vector<64x22xi32> to vector<64x22xf32>
    %49 = vector.broadcast %5 : vector<64x1xf32> to vector<64x22xf32>
    %50 = arith.mulf %48, %49 : vector<64x22xf32>
    %51 = arith.addf %44, %50 : vector<64x22xf32>
    %52 = arith.truncf %51 : vector<64x22xf32> to vector<64x22xbf16>
    %c0_7 = arith.constant 0 : index
    %c0_8 = arith.constant 0 : index
    %53 = vector.load %arg2[%c0_7, %c0_8] : memref<22x32xbf16, #tpu.memory_space<vmem>>, vector<22x32xbf16>
    %cst_9 = arith.constant dense<0.000000e+00> : vector<64x32xf32>
    %54 = tpu.matmul %52, %53, %cst_9 {dimension_numbers = #tpu.dot_dimension_numbers<[1], [0], [0], [1], [0, 0, 1, 1], [], []>} : vector<64x22xbf16>, vector<22x32xbf16>, vector<64x32xf32> -> vector<64x32xf32>
    %cst_10 = arith.constant 0.000000e+00 : f32
    %55 = vector.broadcast %cst_10 : f32 to vector<64x32xf32>
    %56 = arith.maximumf %54, %55 : vector<64x32xf32>
    %57 = arith.truncf %56 : vector<64x32xf32> to vector<64x32xbf16>
    %c0_11 = arith.constant 0 : index
    %c0_12 = arith.constant 0 : index
    %58 = vector.load %arg3[%c0_11, %c0_12] : memref<32x20xbf16, #tpu.memory_space<vmem>>, vector<32x20xbf16>
    %cst_13 = arith.constant dense<0.000000e+00> : vector<64x20xf32>
    %59 = tpu.matmul %57, %58, %cst_13 {dimension_numbers = #tpu.dot_dimension_numbers<[1], [0], [0], [1], [0, 0, 1, 1], [], []>} : vector<64x32xbf16>, vector<32x20xbf16>, vector<64x20xf32> -> vector<64x20xf32>
    %c0_14 = arith.constant 0 : index
    %c0_15 = arith.constant 0 : index
    %60 = vector.load %arg4[%c0_14, %c0_15] : memref<1x20xf32, #tpu.memory_space<vmem>>, vector<1x20xf32>
    %61 = vector.broadcast %60 : vector<1x20xf32> to vector<64x20xf32>
    %62 = arith.addf %59, %61 : vector<64x20xf32>
    %c0_16 = arith.constant 0 : index
    %c0_17 = arith.constant 0 : index
    %63 = vector.load %arg5[%c0_16, %c0_17] : memref<64x20xf32, #tpu.memory_space<vmem>>, vector<64x20xf32>
    tpu.vector_store %arg5[%c0_16, %c0_17], %62 {strides = array<i32>} : memref<64x20xf32, #tpu.memory_space<vmem>>, vector<64x20xf32>,
    %cst_18 = arith.constant dense<0xFF800000> : vector<64xf32>
    %64 = vector.multi_reduction <maximumf>, %62, %cst_18 [1] : vector<64x20xf32> to vector<64xf32>
    %65 = vector.shape_cast %64 : vector<64xf32> to vector<64x1xf32>
    %66 = vector.broadcast %65 : vector<64x1xf32> to vector<64x20xf32>
    %67 = arith.subf %62, %66 : vector<64x20xf32>
    %68 = math.exp %67 : vector<64x20xf32>
    %cst_19 = arith.constant dense<0.000000e+00> : vector<64xf32>
    %69 = vector.multi_reduction <add>, %68, %cst_19 [1] : vector<64x20xf32> to vector<64xf32>
    %70 = vector.shape_cast %69 : vector<64xf32> to vector<64x1xf32>
    %71 = math.log %70 : vector<64x1xf32>
    %72 = arith.addf %65, %71 : vector<64x1xf32>
    %73 = vector.broadcast %7 : vector<64x1xi32> to vector<64x20xi32>
    %74 = arith.cmpi eq, %10, %73 : vector<64x20xi32>
    %cst_20 = arith.constant 0.000000e+00 : f32
    %75 = vector.broadcast %cst_20 : f32 to vector<64x20xf32>
    %76 = arith.select %74, %62, %75 : vector<64x20xi1>, vector<64x20xf32>
    %cst_21 = arith.constant dense<0.000000e+00> : vector<64xf32>
    %77 = vector.multi_reduction <add>, %76, %cst_21 [1] : vector<64x20xf32> to vector<64xf32>
    %78 = vector.shape_cast %77 : vector<64xf32> to vector<64x1xf32>
    %79 = arith.subf %72, %78 : vector<64x1xf32>
    %80 = arith.mulf %79, %8 : vector<64x1xf32>
    %c0_22 = arith.constant 0 : index
    %c0_23 = arith.constant 0 : index
    %81 = vector.load %arg6[%c0_22, %c0_23] : memref<1x1xf32, #tpu.memory_space<vmem>>, vector<1x1xf32>
    %cst_24 = arith.constant dense<0.000000e+00> : vector<1xf32>
    %82 = vector.multi_reduction <add>, %80, %cst_24 [0] : vector<64x1xf32> to vector<1xf32>
    %83 = vector.shape_cast %82 : vector<1xf32> to vector<1x1xf32>
    %84 = arith.addf %81, %83 : vector<1x1xf32>
    %c0_25 = arith.constant 0 : index
    %c0_26 = arith.constant 0 : index
    %85 = vector.load %arg6[%c0_25, %c0_26] : memref<1x1xf32, #tpu.memory_space<vmem>>, vector<1x1xf32>
    tpu.vector_store %arg6[%c0_25, %c0_26], %84 {strides = array<i32>} : memref<1x1xf32, #tpu.memory_space<vmem>>, vector<1x1xf32>,
    return
  }
  func.func @transform_0(%arg0: i32) -> (i32, i32) {
    %c0_i32 = arith.constant 0 : i32
    %c0_i32_0 = arith.constant 0 : i32
    return %arg0, %c0_i32 : i32, i32
  }
  func.func @transform_1(%arg0: i32) -> (i32, i32) {
    %c0_i32 = arith.constant 0 : i32
    %c0_i32_0 = arith.constant 0 : i32
    %c0_i32_1 = arith.constant 0 : i32
    return %c0_i32, %c0_i32_0 : i32, i32
  }
  func.func @transform_2(%arg0: i32) -> (i32, i32) {
    %c0_i32 = arith.constant 0 : i32
    %c0_i32_0 = arith.constant 0 : i32
    %c0_i32_1 = arith.constant 0 : i32
    return %c0_i32, %c0_i32_0 : i32, i32
  }
  func.func @transform_3(%arg0: i32) -> (i32, i32) {
    %c0_i32 = arith.constant 0 : i32
    %c0_i32_0 = arith.constant 0 : i32
    %c0_i32_1 = arith.constant 0 : i32
    return %c0_i32, %c0_i32_0 : i32, i32
  }
  func.func @transform_4(%arg0: i32) -> (i32, i32) {
    %c0_i32 = arith.constant 0 : i32
    %c0_i32_0 = arith.constant 0 : i32
    return %arg0, %c0_i32 : i32, i32
  }
  func.func @transform_5(%arg0: i32) -> (i32, i32) {
    %c0_i32 = arith.constant 0 : i32
    %c0_i32_0 = arith.constant 0 : i32
    %c0_i32_1 = arith.constant 0 : i32
    return %c0_i32, %c0_i32_0 : i32, i32
  }
}

</mosaic_0001>

<llo_original>
// kernel: kcat_diffuser_forward.1
$region0: #{kcat_diffuser_forward.1}
  #allocation0 [shape = 'u32[]', space=smem, size = 0x4, offset = 0x4, fixed_abs, tag = 'smem constant byte address 0x4 - core index']
  #allocation1 [shape = 'u32[144,128]{1,0:T(1,128)}', space=vmem, size = 0x12000, scoped, tag = 'internal scratch']
  %s0 = inlined_call_operand.vmem [shape: f32[128,24], index: 0, kind: input, shape index: {}]
  %s1 = inlined_call_operand.vmem [shape: bf16[22,32], index: 1, kind: input, shape index: {}]
  %s2 = inlined_call_operand.vmem [shape: bf16[32,20], index: 2, kind: input, shape index: {}]
  %s3 = inlined_call_operand.vmem [shape: f32[1,20], index: 3, kind: input, shape index: {}]
  %s4 = inlined_call_operand.vmem [shape: f32[128,20], index: 4, kind: output, shape index: {0}]
  %s5 = inlined_call_operand.hbm [shape: f32[1,1], index: 5, kind: output, shape index: {1}]
  %6 = xla_tuple %s4, %s5
  %s7 = sld [smem:[#allocation0]]
  $region61: #{kcat_diffuser_forward.1} parent=0
    _
  %s9 = ssub.s32 1, %s7
  %s10 = scalar_select 0, %s9, %s7
  $region1: #{kcat_diffuser_forward.1} parent=0
    #allocation2 [shape = 'u8[512]{0}', space=vmem, size = 0x400, scoped, tag = 'output window, operand 1, single buffered']
    #allocation3 [shape = 's32[2]{0}', space=sflag, size = 0x8, scoped, tag = 'scoped memory for kcat_diffuser_forward.1']
    %11 = vsyncpa [#allocation3], 0
    loop: start=0, step=1, limit=4
    $region2: #{kcat_diffuser_forward.1} parent=1 // loop_pre_header
      _
    $region3: #{kcat_diffuser_forward.1} parent=1 // loop_header
      %s13 = sphi 0, %s17
      %p14 = scmp.ge.s32.totalorder %s13, 4
      %s23 = sphi 0, %s25
      %s26 = sphi 0, %s23
      %s27 = sphi 0, %s26
      %s43 = sphi 0, %s27
      %s47 = sphi 0, %s47
      %s49 = sphi 0, %s47
      %s50 = sphi 0, %s49
      %s64 = sphi 0, %s50
      %s68 = sphi 0, %s68
      %s70 = sphi 0, %s68
      %s71 = sphi 0, %s70
      %s85 = sphi 0, %s71
      %s89 = sphi 0, %s89
      %s91 = sphi 0, %s89
      %s92 = sphi 0, %s91
      %s106 = sphi 0, %s92
      %s112 = sphi 0, %s114
      %s115 = sphi 0, %s112
      %s116 = sphi 0, %s115
      %s132 = sphi 0, %s116
      %s136 = sphi 0, %s136
      %s138 = sphi 0, %s136
      %s139 = sphi 0, %s138
      %s153 = sphi 0, %s139
    $region4: #{kcat_diffuser_forward.1} parent=1 // loop_header_branch
      %16 = sbr.rel (%p14) target = $region8
    $region5: #{kcat_diffuser_forward.1} parent=1 // loop_body
      %s18 = ssub.s32 %s13, 1
      %s19 = ssub.s32 %s13, 2
      %s20 = sadd.s32 %s13, 1
      %s21 = ssub.s32 %s13, %s20
      %p22 = scmp.eq.s32.totalorder %s21, 0
      %s24 = sadd.s32 %s23, 1
      %s25 = scalar_select %p22, %s23, %s24
      %p28 = pneg %p22
      %p29 = scmp.eq.s32.totalorder %s13, 1
      %p30 = por %p28, %p29
      %p31 = scmp.ne.s32.totalorder %s23, %s26
      %p32 = scmp.eq.s32.totalorder %s13, 0
      %p33 = por %p31, %p32
      %p34 = scmp.ne.s32.totalorder %s23, %s26
      %p35 = scmp.eq.s32.totalorder %s18, 1
      %p36 = por %p34, %p35
      %p37 = scmp.ne.s32.totalorder %s26, %s27
      %p38 = scmp.eq.s32.totalorder %s18, 0
      %p39 = por %p37, %p38
      %p40 = scmp.ne.s32.totalorder %s26, %s27
      %p41 = scmp.eq.s32.totalorder %s19, 1
      %p42 = por %p40, %p41
      %p44 = scmp.ne.s32.totalorder %s27, %s43
      %p45 = scmp.eq.s32.totalorder %s19, 0
      %p46 = por %p44, %p45
      %s48 = sadd.s32 %s47, 1
      %p51 = scmp.eq.s32.totalorder %s13, 1
      %p52 = scmp.ne.s32.totalorder %s47, %s49
      %p53 = scmp.eq.s32.totalorder %s13, 0
      %p54 = por %p52, %p53
      %p55 = scmp.ne.s32.totalorder %s47, %s49
      %p56 = scmp.eq.s32.totalorder %s18, 1
      %p57 = por %p55, %p56
      %p58 = scmp.ne.s32.totalorder %s49, %s50
      %p59 = scmp.eq.s32.totalorder %s18, 0
      %p60 = por %p58, %p59
      %p61 = scmp.ne.s32.totalorder %s49, %s50
      %p62 = scmp.eq.s32.totalorder %s19, 1
      %p63 = por %p61, %p62
      %p65 = scmp.ne.s32.totalorder %s50, %s64
      %p66 = scmp.eq.s32.totalorder %s19, 0
      %p67 = por %p65, %p66
      %s69 = sadd.s32 %s68, 1
      %p72 = scmp.eq.s32.totalorder %s13, 1
      %p73 = scmp.ne.s32.totalorder %s68, %s70
      %p74 = scmp.eq.s32.totalorder %s13, 0
      %p75 = por %p73, %p74
      %p76 = scmp.ne.s32.totalorder %s68, %s70
      %p77 = scmp.eq.s32.totalorder %s18, 1
      %p78 = por %p76, %p77
      %p79 = scmp.ne.s32.totalorder %s70, %s71
      %p80 = scmp.eq.s32.totalorder %s18, 0
      %p81 = por %p79, %p80
      %p82 = scmp.ne.s32.totalorder %s70, %s71
      %p83 = scmp.eq.s32.totalorder %s19, 1
      %p84 = por %p82, %p83
      %p86 = scmp.ne.s32.totalorder %s71, %s85
      %p87 = scmp.eq.s32.totalorder %s19, 0
      %p88 = por %p86, %p87
      %s90 = sadd.s32 %s89, 1
      %p93 = scmp.eq.s32.totalorder %s13, 1
      %p94 = scmp.ne.s32.totalorder %s89, %s91
      %p95 = scmp.eq.s32.totalorder %s13, 0
      %p96 = por %p94, %p95
      %p97 = scmp.ne.s32.totalorder %s89, %s91
      %p98 = scmp.eq.s32.totalorder %s18, 1
      %p99 = por %p97, %p98
      %p100 = scmp.ne.s32.totalorder %s91, %s92
      %p101 = scmp.eq.s32.totalorder %s18, 0
      %p102 = por %p100, %p101
      %p103 = scmp.ne.s32.totalorder %s91, %s92
      %p104 = scmp.eq.s32.totalorder %s19, 1
      %p105 = por %p103, %p104
      %p107 = scmp.ne.s32.totalorder %s92, %s106
      %p108 = scmp.eq.s32.totalorder %s19, 0
      %p109 = por %p107, %p108
      %s110 = ssub.s32 %s13, %s20
      %p111 = scmp.eq.s32.totalorder %s110, 0
      %s113 = sadd.s32 %s112, 1
      %s114 = scalar_select %p111, %s112, %s113
      %p117 = pneg %p111
      %p118 = scmp.eq.s32.totalorder %s13, 1
      %p119 = por %p117, %p118
      %p120 = scmp.ne.s32.totalorder %s112, %s115
      %p121 = scmp.eq.s32.totalorder %s13, 0
      %p122 = por %p120, %p121
      %p123 = scmp.ne.s32.totalorder %s112, %s115
      %p124 = scmp.eq.s32.totalorder %s18, 1
      %p125 = por %p123, %p124
      %p126 = scmp.ne.s32.totalorder %s115, %s116
      %p127 = scmp.eq.s32.totalorder %s18, 0
      %p128 = por %p126, %p127
      %p129 = scmp.ne.s32.totalorder %s115, %s116
      %p130 = scmp.eq.s32.totalorder %s19, 1
      %p131 = por %p129, %p130
      %p133 = scmp.ne.s32.totalorder %s116, %s132
      %p134 = scmp.eq.s32.totalorder %s19, 0
      %p135 = por %p133, %p134
      %s137 = sadd.s32 %s136, 1
      %p140 = scmp.eq.s32.totalorder %s13, 1
      %p141 = scmp.ne.s32.totalorder %s136, %s138
      %p142 = scmp.eq.s32.totalorder %s13, 0
      %p143 = por %p141, %p142
      %p144 = scmp.ne.s32.totalorder %s136, %s138
      %p145 = scmp.eq.s32.totalorder %s18, 1
      %p146 = por %p144, %p145
      %p147 = scmp.ne.s32.totalorder %s138, %s139
      %p148 = scmp.eq.s32.totalorder %s18, 0
      %p149 = por %p147, %p148
      %p150 = scmp.ne.s32.totalorder %s138, %s139
      %p151 = scmp.eq.s32.totalorder %s19, 1
      %p152 = por %p150, %p151
      %p154 = scmp.ne.s32.totalorder %s139, %s153
      %p155 = scmp.eq.s32.totalorder %s19, 0
      %p156 = por %p154, %p155
      %p157 = scmp.le.s32.totalorder 1, %s13
      %p158 = scmp.lt.s32.totalorder %s13, 3
      %p159 = pnand %p157, %p158
      %p160 = pneg %p159
      // Predicated region
      $region9: #{kcat_diffuser_forward.1} parent=5 // pred_check
        _
      $region10: #{kcat_diffuser_forward.1} parent=5 // pred_check_branch
        %162 = sbr.rel (%p159) target = $region12
      $region11: #{kcat_diffuser_forward.1} parent=5 // pred_region
        %s163 = ssub.s32 %s13, 1
        // Predicated region
        $region13: #{kcat_diffuser_forward.1} parent=11 // pred_check
          %p164 = pneg %p60
        $region14: #{kcat_diffuser_forward.1} parent=11 // pred_check_branch
          %166 = sbr.rel (%p164) target = $region16
        $region15: #{kcat_diffuser_forward.1} parent=11 // pred_region
          _
        $region16: #{kcat_diffuser_forward.1} parent=11 // pred_fallthru
          _
        // Predicated region
        $region17: #{kcat_diffuser_forward.1} parent=11 // pred_check
          %p167 = pneg %p81
        $region18: #{kcat_diffuser_forward.1} parent=11 // pred_check_branch
          %169 = sbr.rel (%p167) target = $region20
        $region19: #{kcat_diffuser_forward.1} parent=11 // pred_region
          _
        $region20: #{kcat_diffuser_forward.1} parent=11 // pred_fallthru
          _
        // Predicated region
        $region21: #{kcat_diffuser_forward.1} parent=11 // pred_check
          %p170 = pneg %p102
        $region22: #{kcat_diffuser_forward.1} parent=11 // pred_check_branch
          %172 = sbr.rel (%p170) target = $region24
        $region23: #{kcat_diffuser_forward.1} parent=11 // pred_region
          _
        $region24: #{kcat_diffuser_forward.1} parent=11 // pred_fallthru
          _
      $region12: #{kcat_diffuser_forward.1} parent=5 // pred_fallthru
        _
      %p173 = scmp.lt.s32.totalorder %s13, 2
      // Predicated region
      $region25: #{kcat_diffuser_forward.1} parent=5 // pred_check
        %p174 = pneg %p173
      $region26: #{kcat_diffuser_forward.1} parent=5 // pred_check_branch
        %176 = sbr.rel (%p174) target = $region28
      $region27: #{kcat_diffuser_forward.1} parent=5 // pred_region
        // Predicated region
        $region29: #{kcat_diffuser_forward.1} parent=27 // pred_check
          %p177 = pneg %p33
        $region30: #{kcat_diffuser_forward.1} parent=27 // pred_check_branch
          %179 = sbr.rel (%p177) target = $region32
        $region31: #{kcat_diffuser_forward.1} parent=27 // pred_region
          %s180 = smul.u32 8, %s13
          %p181 = scmp.lt.s32.totalorder %s180, 15
          %s182 = scalar_select %p181, %s180, 15
          %s183 = smul.addr %s182, 8
          %s184 = scalar_lea.vmem %s0, %s183
          %s185 = smul.u32 8, %s13
        $region32: #{kcat_diffuser_forward.1} parent=27 // pred_fallthru
          _
      $region28: #{kcat_diffuser_forward.1} parent=5 // pred_fallthru
        _
      %p186 = scmp.le.s32.totalorder 1, %s13
      %p187 = scmp.lt.s32.totalorder %s13, 3
      %p188 = pnand %p186, %p187
      %p189 = pneg %p188
      // Predicated region
      $region33: #{kcat_diffuser_forward.1} parent=5 // pred_check
        _
      $region34: #{kcat_diffuser_forward.1} parent=5 // pred_check_branch
        %191 = sbr.rel (%p188) target = $region36
      $region35: #{kcat_diffuser_forward.1} parent=5 // pred_region
        %s192 = ssub.s32 %s13, 1
        %s193 = smul.u32 8, %s18
        %p194 = scmp.lt.s32.totalorder %s193, 15
        %s195 = scalar_select %p194, %s193, 15
        %s196 = smul.addr %s195, 8
        %s197 = scalar_lea.vmem %s0, %s196
        %p198 = pneg %p39
        %p199 = pneg %p36
        %p200 = pneg %p60
        %p201 = pneg %p57
        %p202 = pneg %p81
        %p203 = pneg %p78
        %p204 = pneg %p102
        %p205 = pneg %p99
        %p206 = pneg %p128
        %p207 = pneg %p125
        %s208 = smul.u32 8, %s18
        %p209 = scmp.lt.s32.totalorder %s208, 15
        %s210 = scalar_select %p209, %s208, 15
        %s211 = smul.addr %s210, 8
        %s212 = scalar_lea.vmem %s4, %s211
        %p213 = pneg %p149
        %p214 = pneg %p146
        %s215 = smul.u32 8, %s18
        %p216 = scmp.lt.s32.totalorder %s215, 15
        %s217 = scalar_select %p216, %s215, 15
        %s218 = smul.addr %s217, 8
        %s219 = scalar_lea.vmem %s0, %s218
        %s220 = smul.u32 8, %s18
        %s221 = smul.u32 8, %s18
        %p222 = scmp.lt.s32.totalorder %s221, 15
        %s223 = scalar_select %p222, %s221, 15
        %s224 = smul.addr %s223, 8
        %s225 = scalar_lea.vmem %s4, %s224
        %s226 = smul.u32 8, %s18
        %p228 = scmp.eq.s32.totalorder %s18, 0
        // Predicated region
        $region37: #{kcat_diffuser_forward.1} parent=35 // pred_check
          %p229 = pneg %p228
        $region38: #{kcat_diffuser_forward.1} parent=35 // pred_check_branch
          %231 = sbr.rel (%p229) target = $region40
        $region39: #{kcat_diffuser_forward.1} parent=35 // pred_region
          %vm232 = vcmask 0
          %233 = vst.msk [vmem:[#allocation2] sm:$0x1] %vm232, 0.0
        $region40: #{kcat_diffuser_forward.1} parent=35 // pred_fallthru
          _
        %v234 = vld [vmem:[%s219] sm:$0xff]
        %v235 = vld [vmem:[%s219 + $0x8] sm:$0xff]
        %v236 = vld [vmem:[%s219 + $0x10] sm:$0xff]
        %v237 = vld [vmem:[%s219 + $0x18] sm:$0xff]
        %v238 = vld [vmem:[%s219 + $0x20] sm:$0xff]
        %v239 = vld [vmem:[%s219 + $0x28] sm:$0xff]
        %v240 = vld [vmem:[%s219 + $0x30] sm:$0xff]
        %v241 = vld [vmem:[%s219 + $0x38] sm:$0xff]
        %v242 = vcvt.f32.s32.to.zero.pseudo %v234
        %v243 = vcvt.f32.s32.to.zero.pseudo %v235
        %v244 = vcvt.f32.s32.to.zero.pseudo %v236
        %v245 = vcvt.f32.s32.to.zero.pseudo %v237
        %v246 = vcvt.f32.s32.to.zero.pseudo %v238
        %v247 = vcvt.f32.s32.to.zero.pseudo %v239
        %v248 = vcvt.f32.s32.to.zero.pseudo %v240
        %v249 = vcvt.f32.s32.to.zero.pseudo %v241
        %v250 = vlaneseq
        %v251 = vand.u32 %v250, 127
        %252 = vset.pattern.permute.xlu0 2
        %253 = vperm.xlu0 %252, %v242
        %v254 = vpop.permute.xlu0 %253
        %255 = vset.pattern.permute.xlu0 2
        %256 = vperm.xlu0 %255, %v243
        %v257 = vpop.permute.xlu0 %256
        %258 = vset.pattern.permute.xlu0 2
        %259 = vperm.xlu0 %258, %v244
        %v260 = vpop.permute.xlu0 %259
        %261 = vset.pattern.permute.xlu0 2
        %262 = vperm.xlu0 %261, %v245
        %v263 = vpop.permute.xlu0 %262
        %264 = vset.pattern.permute.xlu0 2
        %265 = vperm.xlu0 %264, %v246
        %v266 = vpop.permute.xlu0 %265
        %267 = vset.pattern.permute.xlu0 2
        %268 = vperm.xlu0 %267, %v247
        %v269 = vpop.permute.xlu0 %268
        %270 = vset.pattern.permute.xlu0 2
        %271 = vperm.xlu0 %270, %v248
        %v272 = vpop.permute.xlu0 %271
        %273 = vset.pattern.permute.xlu0 2
        %274 = vperm.xlu0 %273, %v249
        %v275 = vpop.permute.xlu0 %274
        %vm276 = vcmp.eq.s32.totalorder %v251, %v254
        %vm277 = vcmp.eq.s32.totalorder %v251, %v257
        %vm278 = vcmp.eq.s32.totalorder %v251, %v260
        %vm279 = vcmp.eq.s32.totalorder %v251, %v263
        %vm280 = vcmp.eq.s32.totalorder %v251, %v266
        %vm281 = vcmp.eq.s32.totalorder %v251, %v269
        %vm282 = vcmp.eq.s32.totalorder %v251, %v272
        %vm283 = vcmp.eq.s32.totalorder %v251, %v275
        %v284 = vsel %vm276, 1, 0
        %v285 = vsel %vm277, 1, 0
        %v286 = vsel %vm278, 1, 0
        %v287 = vsel %vm279, 1, 0
        %v288 = vsel %vm280, 1, 0
        %v289 = vsel %vm281, 1, 0
        %v290 = vsel %vm282, 1, 0
        %v291 = vsel %vm283, 1, 0
        %v292 = vcvt.s32.f32 %v284
        %v293 = vcvt.s32.f32 %v285
        %v294 = vcvt.s32.f32 %v286
        %v295 = vcvt.s32.f32 %v287
        %v296 = vcvt.s32.f32 %v288
        %v297 = vcvt.s32.f32 %v289
        %v298 = vcvt.s32.f32 %v290
        %v299 = vcvt.s32.f32 %v291
        %301 = vset.pattern.permute.xlu0 0
        %302 = vperm.xlu0 %301, %v234
        %v303 = vpop.permute.xlu0 %302
        %306 = vset.pattern.permute.xlu0 0
        %307 = vperm.xlu0 %306, %v235
        %v308 = vpop.permute.xlu0 %307
        %311 = vset.pattern.permute.xlu0 0
        %312 = vperm.xlu0 %311, %v236
        %v313 = vpop.permute.xlu0 %312
        %316 = vset.pattern.permute.xlu0 0
        %317 = vperm.xlu0 %316, %v237
        %v318 = vpop.permute.xlu0 %317
        %321 = vset.pattern.permute.xlu0 0
        %322 = vperm.xlu0 %321, %v238
        %v323 = vpop.permute.xlu0 %322
        %326 = vset.pattern.permute.xlu0 0
        %327 = vperm.xlu0 %326, %v239
        %v328 = vpop.permute.xlu0 %327
        %331 = vset.pattern.permute.xlu0 0
        %332 = vperm.xlu0 %331, %v240
        %v333 = vpop.permute.xlu0 %332
        %336 = vset.pattern.permute.xlu0 0
        %337 = vperm.xlu0 %336, %v241
        %v338 = vpop.permute.xlu0 %337
        %v340 = vmul.f32 %v303, %v292
        %v341 = vmul.f32 %v308, %v293
        %v342 = vmul.f32 %v313, %v294
        %v343 = vmul.f32 %v318, %v295
        %v344 = vmul.f32 %v323, %v296
        %v345 = vmul.f32 %v328, %v297
        %v346 = vmul.f32 %v333, %v298
        %v347 = vmul.f32 %v338, %v299
        %v348 = vsub.f32 1.0, %v234
        %v349 = vsub.f32 1.0, %v235
        %v350 = vsub.f32 1.0, %v236
        %v351 = vsub.f32 1.0, %v237
        %v352 = vsub.f32 1.0, %v238
        %v353 = vsub.f32 1.0, %v239
        %v354 = vsub.f32 1.0, %v240
        %v355 = vsub.f32 1.0, %v241
        %v356 = vmul.f32 %v348, 0.05
        %v357 = vmul.f32 %v349, 0.05
        %v358 = vmul.f32 %v350, 0.05
        %v359 = vmul.f32 %v351, 0.05
        %v360 = vmul.f32 %v352, 0.05
        %v361 = vmul.f32 %v353, 0.05
        %v362 = vmul.f32 %v354, 0.05
        %v363 = vmul.f32 %v355, 0.05
        %365 = vset.pattern.permute.xlu0 0
        %366 = vperm.xlu0 %365, %v356
        %v367 = vpop.permute.xlu0 %366
        %370 = vset.pattern.permute.xlu0 0
        %371 = vperm.xlu0 %370, %v357
        %v372 = vpop.permute.xlu0 %371
        %375 = vset.pattern.permute.xlu0 0
        %376 = vperm.xlu0 %375, %v358
        %v377 = vpop.permute.xlu0 %376
        %380 = vset.pattern.permute.xlu0 0
        %381 = vperm.xlu0 %380, %v359
        %v382 = vpop.permute.xlu0 %381
        %385 = vset.pattern.permute.xlu0 0
        %386 = vperm.xlu0 %385, %v360
        %v387 = vpop.permute.xlu0 %386
        %390 = vset.pattern.permute.xlu0 0
        %391 = vperm.xlu0 %390, %v361
        %v392 = vpop.permute.xlu0 %391
        %395 = vset.pattern.permute.xlu0 0
        %396 = vperm.xlu0 %395, %v362
        %v397 = vpop.permute.xlu0 %396
        %400 = vset.pattern.permute.xlu0 0
        %401 = vperm.xlu0 %400, %v363
        %v402 = vpop.permute.xlu0 %401
        %v404 = vadd.f32 %v340, %v367
        %v405 = vadd.f32 %v341, %v372
        %v406 = vadd.f32 %v342, %v377
        %v407 = vadd.f32 %v343, %v382
        %v408 = vadd.f32 %v344, %v387
        %v409 = vadd.f32 %v345, %v392
        %v410 = vadd.f32 %v346, %v397
        %v411 = vadd.f32 %v347, %v402
        %v412 = vmax.f32 %v404, 1e-30
        %v413 = vmax.f32 %v405, 1e-30
        %v414 = vmax.f32 %v406, 1e-30
        %v415 = vmax.f32 %v407, 1e-30
        %v416 = vmax.f32 %v408, 1e-30
        %v417 = vmax.f32 %v409, 1e-30
        %v418 = vmax.f32 %v410, 1e-30
        %v419 = vmax.f32 %v411, 1e-30
        %v420 = vlog2.pop %v412
        %v421 = vmul.f32 %v420, 0.6931472
        %v422 = vlog2.pop %v413
        %v423 = vmul.f32 %v422, 0.6931472
        %v424 = vlog2.pop %v414
        %v425 = vmul.f32 %v424, 0.6931472
        %v426 = vlog2.pop %v415
        %v427 = vmul.f32 %v426, 0.6931472
        %v428 = vlog2.pop %v416
        %v429 = vmul.f32 %v428, 0.6931472
        %v430 = vlog2.pop %v417
        %v431 = vmul.f32 %v430, 0.6931472
        %v432 = vlog2.pop %v418
        %v433 = vmul.f32 %v432, 0.6931472
        %v434 = vlog2.pop %v419
        %v435 = vmul.f32 %v434, 0.6931472
        %436 = vrot.lane.b32.xlu0 %v234, 124
        %v437 = vpop.permute.xlu0 %436
        %438 = vrot.lane.b32.xlu0 %v235, 124
        %v439 = vpop.permute.xlu0 %438
        %440 = vrot.lane.b32.xlu0 %v236, 124
        %v441 = vpop.permute.xlu0 %440
        %442 = vrot.lane.b32.xlu0 %v237, 124
        %v443 = vpop.permute.xlu0 %442
        %444 = vrot.lane.b32.xlu0 %v238, 124
        %v445 = vpop.permute.xlu0 %444
        %446 = vrot.lane.b32.xlu0 %v239, 124
        %v447 = vpop.permute.xlu0 %446
        %448 = vrot.lane.b32.xlu0 %v240, 124
        %v449 = vpop.permute.xlu0 %448
        %450 = vrot.lane.b32.xlu0 %v241, 124
        %v451 = vpop.permute.xlu0 %450
        %v460 = vadd.f32 %v421, %v437
        %v461 = vadd.f32 %v423, %v439
        %v462 = vadd.f32 %v425, %v441
        %v463 = vadd.f32 %v427, %v443
        %v464 = vadd.f32 %v429, %v445
        %v465 = vadd.f32 %v431, %v447
        %v466 = vadd.f32 %v433, %v449
        %v467 = vadd.f32 %v435, %v451
        %vm468 = vcmask 162816
        %v469 = vsel %vm468, %v460, -inf
        %470 = vmax.xlane.f32.xlu0 %v469
        %v471 = vpop.xlane.xlu0 %470
        %v472 = vsel %vm468, %v461, -inf
        %473 = vmax.xlane.f32.xlu0 %v472
        %v474 = vpop.xlane.xlu0 %473
        %v475 = vsel %vm468, %v462, -inf
        %476 = vmax.xlane.f32.xlu0 %v475
        %v477 = vpop.xlane.xlu0 %476
        %v478 = vsel %vm468, %v463, -inf
        %479 = vmax.xlane.f32.xlu0 %v478
        %v480 = vpop.xlane.xlu0 %479
        %v481 = vsel %vm468, %v464, -inf
        %482 = vmax.xlane.f32.xlu0 %v481
        %v483 = vpop.xlane.xlu0 %482
        %v484 = vsel %vm468, %v465, -inf
        %485 = vmax.xlane.f32.xlu0 %v484
        %v486 = vpop.xlane.xlu0 %485
        %v487 = vsel %vm468, %v466, -inf
        %488 = vmax.xlane.f32.xlu0 %v487
        %v489 = vpop.xlane.xlu0 %488
        %v490 = vsel %vm468, %v467, -inf
        %491 = vmax.xlane.f32.xlu0 %v490
        %v492 = vpop.xlane.xlu0 %491
        %vm493 = vcmp.eq.f32.partialorder %v460, %v471
        %vm494 = vcmp.eq.f32.partialorder %v461, %v474
        %vm495 = vcmp.eq.f32.partialorder %v462, %v477
        %vm496 = vcmp.eq.f32.partialorder %v463, %v480
        %vm497 = vcmp.eq.f32.partialorder %v464, %v483
        %vm498 = vcmp.eq.f32.partialorder %v465, %v486
        %vm499 = vcmp.eq.f32.partialorder %v466, %v489
        %vm500 = vcmp.eq.f32.partialorder %v467, %v492
        %v501 = vsel %vm493, %v251, 20
        %v502 = vsel %vm494, %v251, 20
        %v503 = vsel %vm495, %v251, 20
        %v504 = vsel %vm496, %v251, 20
        %v505 = vsel %vm497, %v251, 20
        %v506 = vsel %vm498, %v251, 20
        %v507 = vsel %vm499, %v251, 20
        %v508 = vsel %vm500, %v251, 20
        %v509 = vsel %vm468, %v501, 2147483647
        %v510 = vand.u32 %v509, 65535
        %v511 = vshra.s32 %v509, 16
        %v512 = vcvt.s32.f32 %v510
        %v513 = vcvt.s32.f32 %v511
        %514 = vmin.xlane.f32.xlu0 %v513
        %v515 = vpop.xlane.xlu0 %514
        %vm516 = vcmp.eq.f32.partialorder %v513, %v515
        %v517 = vsel %vm516, %v512, inf
        %518 = vmin.xlane.f32.xlu0 %v517
        %v519 = vpop.xlane.xlu0 %518
        %v520 = vcvt.f32.s32 %v519
        %v521 = vcvt.f32.s32 %v515
        %v522 = vshll.u32 %v521, 16
        %v523 = vadd.s32 %v522, %v520
        %v524 = vsel %vm468, %v502, 2147483647
        %v525 = vand.u32 %v524, 65535
        %v526 = vshra.s32 %v524, 16
        %v527 = vcvt.s32.f32 %v525
        %v528 = vcvt.s32.f32 %v526
        %529 = vmin.xlane.f32.xlu0 %v528
        %v530 = vpop.xlane.xlu0 %529
        %vm531 = vcmp.eq.f32.partialorder %v528, %v530
        %v532 = vsel %vm531, %v527, inf
        %533 = vmin.xlane.f32.xlu0 %v532
        %v534 = vpop.xlane.xlu0 %533
        %v535 = vcvt.f32.s32 %v534
        %v536 = vcvt.f32.s32 %v530
        %v537 = vshll.u32 %v536, 16
        %v538 = vadd.s32 %v537, %v535
        %v539 = vsel %vm468, %v503, 2147483647
        %v540 = vand.u32 %v539, 65535
        %v541 = vshra.s32 %v539, 16
        %v542 = vcvt.s32.f32 %v540
        %v543 = vcvt.s32.f32 %v541
        %544 = vmin.xlane.f32.xlu0 %v543
        %v545 = vpop.xlane.xlu0 %544
        %vm546 = vcmp.eq.f32.partialorder %v543, %v545
        %v547 = vsel %vm546, %v542, inf
        %548 = vmin.xlane.f32.xlu0 %v547
        %v549 = vpop.xlane.xlu0 %548
        %v550 = vcvt.f32.s32 %v549
        %v551 = vcvt.f32.s32 %v545
        %v552 = vshll.u32 %v551, 16
        %v553 = vadd.s32 %v552, %v550
        %v554 = vsel %vm468, %v504, 2147483647
        %v555 = vand.u32 %v554, 65535
        %v556 = vshra.s32 %v554, 16
        %v557 = vcvt.s32.f32 %v555
        %v558 = vcvt.s32.f32 %v556
        %559 = vmin.xlane.f32.xlu0 %v558
        %v560 = vpop.xlane.xlu0 %559
        %vm561 = vcmp.eq.f32.partialorder %v558, %v560
        %v562 = vsel %vm561, %v557, inf
        %563 = vmin.xlane.f32.xlu0 %v562
        %v564 = vpop.xlane.xlu0 %563
        %v565 = vcvt.f32.s32 %v564
        %v566 = vcvt.f32.s32 %v560
        %v567 = vshll.u32 %v566, 16
        %v568 = vadd.s32 %v567, %v565
        %v569 = vsel %vm468, %v505, 2147483647
        %v570 = vand.u32 %v569, 65535
        %v571 = vshra.s32 %v569, 16
        %v572 = vcvt.s32.f32 %v570
        %v573 = vcvt.s32.f32 %v571
        %574 = vmin.xlane.f32.xlu0 %v573
        %v575 = vpop.xlane.xlu0 %574
        %vm576 = vcmp.eq.f32.partialorder %v573, %v575
        %v577 = vsel %vm576, %v572, inf
        %578 = vmin.xlane.f32.xlu0 %v577
        %v579 = vpop.xlane.xlu0 %578
        %v580 = vcvt.f32.s32 %v579
        %v581 = vcvt.f32.s32 %v575
        %v582 = vshll.u32 %v581, 16
        %v583 = vadd.s32 %v582, %v580
        %v584 = vsel %vm468, %v506, 2147483647
        %v585 = vand.u32 %v584, 65535
        %v586 = vshra.s32 %v584, 16
        %v587 = vcvt.s32.f32 %v585
        %v588 = vcvt.s32.f32 %v586
        %589 = vmin.xlane.f32.xlu0 %v588
        %v590 = vpop.xlane.xlu0 %589
        %vm591 = vcmp.eq.f32.partialorder %v588, %v590
        %v592 = vsel %vm591, %v587, inf
        %593 = vmin.xlane.f32.xlu0 %v592
        %v594 = vpop.xlane.xlu0 %593
        %v595 = vcvt.f32.s32 %v594
        %v596 = vcvt.f32.s32 %v590
        %v597 = vshll.u32 %v596, 16
        %v598 = vadd.s32 %v597, %v595
        %v599 = vsel %vm468, %v507, 2147483647
        %v600 = vand.u32 %v599, 65535
        %v601 = vshra.s32 %v599, 16
        %v602 = vcvt.s32.f32 %v600
        %v603 = vcvt.s32.f32 %v601
        %604 = vmin.xlane.f32.xlu0 %v603
        %v605 = vpop.xlane.xlu0 %604
        %vm606 = vcmp.eq.f32.partialorder %v603, %v605
        %v607 = vsel %vm606, %v602, inf
        %608 = vmin.xlane.f32.xlu0 %v607
        %v609 = vpop.xlane.xlu0 %608
        %v610 = vcvt.f32.s32 %v609
        %v611 = vcvt.f32.s32 %v605
        %v612 = vshll.u32 %v611, 16
        %v613 = vadd.s32 %v612, %v610
        %v614 = vsel %vm468, %v508, 2147483647
        %v615 = vand.u32 %v614, 65535
        %v616 = vshra.s32 %v614, 16
        %v617 = vcvt.s32.f32 %v615
        %v618 = vcvt.s32.f32 %v616
        %619 = vmin.xlane.f32.xlu0 %v618
        %v620 = vpop.xlane.xlu0 %619
        %vm621 = vcmp.eq.f32.partialorder %v618, %v620
        %v622 = vsel %vm621, %v617, inf
        %623 = vmin.xlane.f32.xlu0 %v622
        %v624 = vpop.xlane.xlu0 %623
        %v625 = vcvt.f32.s32 %v624
        %v626 = vcvt.f32.s32 %v620
        %v627 = vshll.u32 %v626, 16
        %v628 = vadd.s32 %v627, %v625
        %vm629 = vcmp.eq.s32.totalorder %v251, %v523
        %vm630 = vcmp.eq.s32.totalorder %v251, %v538
        %vm631 = vcmp.eq.s32.totalorder %v251, %v553
        %vm632 = vcmp.eq.s32.totalorder %v251, %v568
        %vm633 = vcmp.eq.s32.totalorder %v251, %v583
        %vm634 = vcmp.eq.s32.totalorder %v251, %v598
        %vm635 = vcmp.eq.s32.totalorder %v251, %v613
        %vm636 = vcmp.eq.s32.totalorder %v251, %v628
        %v637 = vsel %vm629, 1, 0
        %v638 = vsel %vm630, 1, 0
        %v639 = vsel %vm631, 1, 0
        %v640 = vsel %vm632, 1, 0
        %v641 = vsel %vm633, 1, 0
        %v642 = vsel %vm634, 1, 0
        %v643 = vsel %vm635, 1, 0
        %v644 = vsel %vm636, 1, 0
        %v645 = vcvt.s32.f32 %v637
        %v646 = vcvt.s32.f32 %v638
        %v647 = vcvt.s32.f32 %v639
        %v648 = vcvt.s32.f32 %v640
        %v649 = vcvt.s32.f32 %v641
        %v650 = vcvt.s32.f32 %v642
        %v651 = vcvt.s32.f32 %v643
        %v652 = vcvt.s32.f32 %v644
        %vm653 = vcmp.eq.s32.totalorder %v251, 20
        %v654 = vsel %vm653, 1, 0
        %v655 = vcvt.s32.f32 %v654
        %v656 = vadd.f32 %v645, %v655
        %v657 = vadd.f32 %v646, %v655
        %v658 = vadd.f32 %v647, %v655
        %v659 = vadd.f32 %v648, %v655
        %v660 = vadd.f32 %v649, %v655
        %v661 = vadd.f32 %v650, %v655
        %v662 = vadd.f32 %v651, %v655
        %v663 = vadd.f32 %v652, %v655
        %vm664 = vcmp.eq.s32.totalorder %v251, 21
        %v665 = vsel %vm664, 1, 0
        %v666 = vcvt.s32.f32 %v665
        %667 = vset.pattern.permute.xlu0 1
        %668 = vperm.xlu0 %667, %v234
        %v669 = vpop.permute.xlu0 %668
        %671 = vset.pattern.permute.xlu0 1
        %672 = vperm.xlu0 %671, %v235
        %v673 = vpop.permute.xlu0 %672
        %675 = vset.pattern.permute.xlu0 1
        %676 = vperm.xlu0 %675, %v236
        %v677 = vpop.permute.xlu0 %676
        %679 = vset.pattern.permute.xlu0 1
        %680 = vperm.xlu0 %679, %v237
        %v681 = vpop.permute.xlu0 %680
        %683 = vset.pattern.permute.xlu0 1
        %684 = vperm.xlu0 %683, %v238
        %v685 = vpop.permute.xlu0 %684
        %687 = vset.pattern.permute.xlu0 1
        %688 = vperm.xlu0 %687, %v239
        %v689 = vpop.permute.xlu0 %688
        %691 = vset.pattern.permute.xlu0 1
        %692 = vperm.xlu0 %691, %v240
        %v693 = vpop.permute.xlu0 %692
        %695 = vset.pattern.permute.xlu0 1
        %696 = vperm.xlu0 %695, %v241
        %v697 = vpop.permute.xlu0 %696
        %v699 = vmul.f32 %v666, %v669
        %v700 = vmul.f32 %v666, %v673
        %v701 = vmul.f32 %v666, %v677
        %v702 = vmul.f32 %v666, %v681
        %v703 = vmul.f32 %v666, %v685
        %v704 = vmul.f32 %v666, %v689
        %v705 = vmul.f32 %v666, %v693
        %v706 = vmul.f32 %v666, %v697
        %v707 = vadd.f32 %v656, %v699
        %v708 = vadd.f32 %v657, %v700
        %v709 = vadd.f32 %v658, %v701
        %v710 = vadd.f32 %v659, %v702
        %v711 = vadd.f32 %v660, %v703
        %v712 = vadd.f32 %v661, %v704
        %v713 = vadd.f32 %v662, %v705
        %v714 = vadd.f32 %v663, %v706
        %v715 = vpack.c.bf16 %v708, %v707
        %v716 = vpack.c.bf16 %v710, %v709
        %v717 = vpack.c.bf16 %v712, %v711
        %v718 = vpack.c.bf16 %v714, %v713
        %v719 = vld [vmem:[%s1] sm:$0xf]
        %v720 = vld [vmem:[%s1 + $0x4] sm:$0xf]
        %v721 = vld [vmem:[%s1 + $0x8] sm:$0x7]
        %v725 = vunpack.c.l.b16 %v719
        %v726 = vunpack.c.l.b16 %v720
        %v727 = vunpack.c.l.b16 %v721
        %v728 = vpack.c.b16 %v726, %v725
        %v729 = vpack.c.b16 %v727, %v727
        %vm731 = vcmask 179200
        %v733 = vsel %vm731, %v715, 0
        %v736 = vsel %vm731, %v716, 0
        %v739 = vsel %vm731, %v717, 0
        %v742 = vsel %vm731, %v718, 0
        %vm744 = vcmask 1042432
        %v746 = vsel %vm744, %v729, 0
        %748 = vmatprep.subr.bf16.mxu0 0
        %749 = vmatpush1.bf16.msra.mxu0 %v728
        %750 = vmatprep.subr.bf16.mxu0 0
        %751 = vmatpush1.bf16.msra.mxu0 %v746
        %752 = vmatprep.subr.bf16.mxu0 0
        %753 = vmatpush1.bf16.msra.mxu0 0
        %754 = vmatprep.subr.bf16.mxu0 0
        %755 = vmatpush1.bf16.msra.mxu0 0
        %756 = vmatprep.subr.bf16.mxu0 0
        %757 = vmatpush1.bf16.msra.mxu0 0
        %758 = vmatprep.subr.bf16.mxu0 0
        %759 = vmatpush1.bf16.msra.mxu0 0
        %760 = vmatprep.subr.bf16.mxu0 0
        %761 = vmatpush1.bf16.msra.mxu0 0
        %762 = vmatprep.subr.bf16.mxu0 0
        %763 = vmatpush1.bf16.msra.mxu0 0
        %764 = vmatprep.subr.bf16.mxu0 0
        %765 = vmatpush1.bf16.msra.mxu0 0
        %766 = vmatprep.subr.bf16.mxu0 0
        %767 = vmatpush1.bf16.msra.mxu0 0
        %768 = vmatprep.subr.bf16.mxu0 0
        %769 = vmatpush1.bf16.msra.mxu0 0
        %770 = vmatprep.subr.bf16.mxu0 0
        %771 = vmatpush1.bf16.msra.mxu0 0
        %772 = vmatprep.subr.bf16.mxu0 0
        %773 = vmatpush1.bf16.msra.mxu0 0
        %774 = vmatprep.subr.bf16.mxu0 0
        %775 = vmatpush1.bf16.msra.mxu0 0
        %776 = vmatprep.subr.bf16.mxu0 0
        %777 = vmatpush1.bf16.msra.mxu0 0
        %778 = vmatprep.subr.bf16.mxu0 0
        %779 = vmatpush1.bf16.msra.mxu0 0
        %780 = vmatprep.mubr.bf16.mxu0 0
        %781 = vmatmul.mubr.bf16.gmra.mrb[0].mxu0 %v733
        %v782 = vpop.f32.mrb[0].mxu0
        %v783 = vadd.f32 0.0, %v782
        %v784 = vpop.f32.mrb[0].mxu0
        %v785 = vpop.f32.mrb[0].mxu0
        %v786 = vadd.f32 0.0, %v785
        %v787 = vpop.f32.mrb[0].mxu0
        %788 = vmatprep.mubr.bf16.mxu0 0
        %789 = vmatmul.mubr.bf16.gmra.mrb[0].mxu0 %v736
        %v790 = vpop.f32.mrb[0].mxu0
        %v791 = vadd.f32 0.0, %v790
        %v792 = vpop.f32.mrb[0].mxu0
        %v793 = vpop.f32.mrb[0].mxu0
        %v794 = vadd.f32 0.0, %v793
        %v795 = vpop.f32.mrb[0].mxu0
        %796 = vmatprep.mubr.bf16.mxu0 0
        %797 = vmatmul.mubr.bf16.gmra.mrb[0].mxu0 %v739
        %v798 = vpop.f32.mrb[0].mxu0
        %v799 = vadd.f32 0.0, %v798
        %v800 = vpop.f32.mrb[0].mxu0
        %v801 = vpop.f32.mrb[0].mxu0
        %v802 = vadd.f32 0.0, %v801
        %v803 = vpop.f32.mrb[0].mxu0
        %804 = vmatprep.mubr.bf16.mxu0 0
        %805 = vmatmul.mubr.bf16.gmra.mrb[0].mxu0 %v742
        %v806 = vpop.f32.mrb[0].mxu0
        %v807 = vadd.f32 0.0, %v806
        %v808 = vpop.f32.mrb[0].mxu0
        %v809 = vpop.f32.mrb[0].mxu0
        %v810 = vadd.f32 0.0, %v809
        %v811 = vpop.f32.mrb[0].mxu0
        %812 = vdwg.mxu0
        %v813 = vmax.f32 %v783, 0.0
        %v814 = vmax.f32 %v786, 0.0
        %v815 = vmax.f32 %v791, 0.0
        %v816 = vmax.f32 %v794, 0.0
        %v817 = vmax.f32 %v799, 0.0
        %v818 = vmax.f32 %v802, 0.0
        %v819 = vmax.f32 %v807, 0.0
        %v820 = vmax.f32 %v810, 0.0
        %v821 = vpack.c.bf16 %v814, %v813
        %v822 = vpack.c.bf16 %v816, %v815
        %v823 = vpack.c.bf16 %v818, %v817
        %v824 = vpack.c.bf16 %v820, %v819
        %v825 = vld [vmem:[%s2] sm:$0xf]
        %v826 = vld [vmem:[%s2 + $0x4] sm:$0xf]
        %v827 = vld [vmem:[%s2 + $0x8] sm:$0xf]
        %v828 = vld [vmem:[%s2 + $0xc] sm:$0xf]
        %v829 = vld [vmem:[%s3] sm:$0x1]
        %v831 = vlaneseq
        %v832 = vshrl.u32 %v831, 7
        %v833 = vsub.s32 0, %v832
        %v834 = vrot.slane %v829, %v833
        %v840 = vunpack.c.l.b16 %v825
        %v841 = vunpack.c.l.b16 %v826
        %v842 = vunpack.c.l.b16 %v827
        %v843 = vunpack.c.l.b16 %v828
        %v844 = vpack.c.b16 %v841, %v840
        %v845 = vpack.c.b16 %v843, %v842
        %vm848 = vcmask 261120
        %v850 = vsel %vm848, %v821, 0
        %v853 = vsel %vm848, %v822, 0
        %v856 = vsel %vm848, %v823, 0
        %v859 = vsel %vm848, %v824, 0
        %861 = vmatprep.subr.bf16.mxu0 0
        %862 = vmatpush1.bf16.msra.mxu0 %v844
        %863 = vmatprep.subr.bf16.mxu0 0
        %864 = vmatpush1.bf16.msra.mxu0 %v845
        %865 = vmatprep.subr.bf16.mxu0 0
        %866 = vmatpush1.bf16.msra.mxu0 0
        %867 = vmatprep.subr.bf16.mxu0 0
        %868 = vmatpush1.bf16.msra.mxu0 0
        %869 = vmatprep.subr.bf16.mxu0 0
        %870 = vmatpush1.bf16.msra.mxu0 0
        %871 = vmatprep.subr.bf16.mxu0 0
        %872 = vmatpush1.bf16.msra.mxu0 0
        %873 = vmatprep.subr.bf16.mxu0 0
        %874 = vmatpush1.bf16.msra.mxu0 0
        %875 = vmatprep.subr.bf16.mxu0 0
        %876 = vmatpush1.bf16.msra.mxu0 0
        %877 = vmatprep.subr.bf16.mxu0 0
        %878 = vmatpush1.bf16.msra.mxu0 0
        %879 = vmatprep.subr.bf16.mxu0 0
        %880 = vmatpush1.bf16.msra.mxu0 0
        %881 = vmatprep.subr.bf16.mxu0 0
        %882 = vmatpush1.bf16.msra.mxu0 0
        %883 = vmatprep.subr.bf16.mxu0 0
        %884 = vmatpush1.bf16.msra.mxu0 0
        %885 = vmatprep.subr.bf16.mxu0 0
        %886 = vmatpush1.bf16.msra.mxu0 0
        %887 = vmatprep.subr.bf16.mxu0 0
        %888 = vmatpush1.bf16.msra.mxu0 0
        %889 = vmatprep.subr.bf16.mxu0 0
        %890 = vmatpush1.bf16.msra.mxu0 0
        %891 = vmatprep.subr.bf16.mxu0 0
        %892 = vmatpush1.bf16.msra.mxu0 0
        %893 = vmatprep.mubr.bf16.mxu0 0
        %894 = vmatmul.mubr.bf16.gmra.mrb[0].mxu0 %v850
        %v895 = vpop.f32.mrb[0].mxu0
        %v896 = vadd.f32 %v834, %v895
        %v897 = vpop.f32.mrb[0].mxu0
        %v898 = vpop.f32.mrb[0].mxu0
        %v899 = vadd.f32 %v834, %v898
        %v900 = vpop.f32.mrb[0].mxu0
        %901 = vmatprep.mubr.bf16.mxu0 0
        %902 = vmatmul.mubr.bf16.gmra.mrb[0].mxu0 %v853
        %v903 = vpop.f32.mrb[0].mxu0
        %v904 = vadd.f32 %v834, %v903
        %v905 = vpop.f32.mrb[0].mxu0
        %v906 = vpop.f32.mrb[0].mxu0
        %v907 = vadd.f32 %v834, %v906
        %v908 = vpop.f32.mrb[0].mxu0
        %909 = vmatprep.mubr.bf16.mxu0 0
        %910 = vmatmul.mubr.bf16.gmra.mrb[0].mxu0 %v856
        %v911 = vpop.f32.mrb[0].mxu0
        %v912 = vadd.f32 %v834, %v911
        %v913 = vpop.f32.mrb[0].mxu0
        %v914 = vpop.f32.mrb[0].mxu0
        %v915 = vadd.f32 %v834, %v914
        %v916 = vpop.f32.mrb[0].mxu0
        %917 = vmatprep.mubr.bf16.mxu0 0
        %918 = vmatmul.mubr.bf16.gmra.mrb[0].mxu0 %v859
        %v919 = vpop.f32.mrb[0].mxu0
        %v920 = vadd.f32 %v834, %v919
        %v921 = vpop.f32.mrb[0].mxu0
        %v922 = vpop.f32.mrb[0].mxu0
        %v923 = vadd.f32 %v834, %v922
        %v924 = vpop.f32.mrb[0].mxu0
        %925 = vdwg.mxu0
        %926 = vst.msk [vmem:[%s225] sm:$0xff] %vm468, %v896
        %927 = vst.msk [vmem:[%s225 + $0x8] sm:$0xff] %vm468, %v899
        %928 = vst.msk [vmem:[%s225 + $0x10] sm:$0xff] %vm468, %v904
        %929 = vst.msk [vmem:[%s225 + $0x18] sm:$0xff] %vm468, %v907
        %930 = vst.msk [vmem:[%s225 + $0x20] sm:$0xff] %vm468, %v912
        %931 = vst.msk [vmem:[%s225 + $0x28] sm:$0xff] %vm468, %v915
        %932 = vst.msk [vmem:[%s225 + $0x30] sm:$0xff] %vm468, %v920
        %933 = vst.msk [vmem:[%s225 + $0x38] sm:$0xff] %vm468, %v923
        %v934 = vsel %vm468, %v896, -inf
        %935 = vmax.xlane.f32.xlu0 %v934
        %v936 = vpop.xlane.xlu0 %935
        %v937 = vsel %vm468, %v899, -inf
        %938 = vmax.xlane.f32.xlu0 %v937
        %v939 = vpop.xlane.xlu0 %938
        %v940 = vsel %vm468, %v904, -inf
        %941 = vmax.xlane.f32.xlu0 %v940
        %v942 = vpop.xlane.xlu0 %941
        %v943 = vsel %vm468, %v907, -inf
        %944 = vmax.xlane.f32.xlu0 %v943
        %v945 = vpop.xlane.xlu0 %944
        %v946 = vsel %vm468, %v912, -inf
        %947 = vmax.xlane.f32.xlu0 %v946
        %v948 = vpop.xlane.xlu0 %947
        %v949 = vsel %vm468, %v915, -inf
        %950 = vmax.xlane.f32.xlu0 %v949
        %v951 = vpop.xlane.xlu0 %950
        %v952 = vsel %vm468, %v920, -inf
        %953 = vmax.xlane.f32.xlu0 %v952
        %v954 = vpop.xlane.xlu0 %953
        %v955 = vsel %vm468, %v923, -inf
        %956 = vmax.xlane.f32.xlu0 %v955
        %v957 = vpop.xlane.xlu0 %956
        %v958 = vsub.f32 %v896, %v936
        %v959 = vsub.f32 %v899, %v939
        %v960 = vsub.f32 %v904, %v942
        %v961 = vsub.f32 %v907, %v945
        %v962 = vsub.f32 %v912, %v948
        %v963 = vsub.f32 %v915, %v951
        %v964 = vsub.f32 %v920, %v954
        %v965 = vsub.f32 %v923, %v957
        %v966 = vmul.f32 %v958, 1.442695
        %v967 = vpow.pop %v966
        %v968 = vmul.f32 %v959, 1.442695
        %v969 = vpow.pop %v968
        %v970 = vmul.f32 %v960, 1.442695
        %v971 = vpow.pop %v970
        %v972 = vmul.f32 %v961, 1.442695
        %v973 = vpow.pop %v972
        %v974 = vmul.f32 %v962, 1.442695
        %v975 = vpow.pop %v974
        %v976 = vmul.f32 %v963, 1.442695
        %v977 = vpow.pop %v976
        %v978 = vmul.f32 %v964, 1.442695
        %v979 = vpow.pop %v978
        %v980 = vmul.f32 %v965, 1.442695
        %v981 = vpow.pop %v980
        %v982 = vsel %vm468, %v967, 0.0
        %983 = vadd.xlane.f32.xlu0 %v982
        %v984 = vpop.xlane.xlu0 %983
        %v985 = vsel %vm468, %v969, 0.0
        %986 = vadd.xlane.f32.xlu0 %v985
        %v987 = vpop.xlane.xlu0 %986
        %v988 = vsel %vm468, %v971, 0.0
        %989 = vadd.xlane.f32.xlu0 %v988
        %v990 = vpop.xlane.xlu0 %989
        %v991 = vsel %vm468, %v973, 0.0
        %992 = vadd.xlane.f32.xlu0 %v991
        %v993 = vpop.xlane.xlu0 %992
        %v994 = vsel %vm468, %v975, 0.0
        %995 = vadd.xlane.f32.xlu0 %v994
        %v996 = vpop.xlane.xlu0 %995
        %v997 = vsel %vm468, %v977, 0.0
        %998 = vadd.xlane.f32.xlu0 %v997
        %v999 = vpop.xlane.xlu0 %998
        %v1000 = vsel %vm468, %v979, 0.0
        %1001 = vadd.xlane.f32.xlu0 %v1000
        %v1002 = vpop.xlane.xlu0 %1001
        %v1003 = vsel %vm468, %v981, 0.0
        %1004 = vadd.xlane.f32.xlu0 %v1003
        %v1005 = vpop.xlane.xlu0 %1004
        %v1006 = vlog2.pop %v984
        %v1007 = vmul.f32 %v1006, 0.6931472
        %v1008 = vlog2.pop %v987
        %v1009 = vmul.f32 %v1008, 0.6931472
        %v1010 = vlog2.pop %v990
        %v1011 = vmul.f32 %v1010, 0.6931472
        %v1012 = vlog2.pop %v993
        %v1013 = vmul.f32 %v1012, 0.6931472
        %v1014 = vlog2.pop %v996
        %v1015 = vmul.f32 %v1014, 0.6931472
        %v1016 = vlog2.pop %v999
        %v1017 = vmul.f32 %v1016, 0.6931472
        %v1018 = vlog2.pop %v1002
        %v1019 = vmul.f32 %v1018, 0.6931472
        %v1020 = vlog2.pop %v1005
        %v1021 = vmul.f32 %v1020, 0.6931472
        %v1022 = vadd.f32 %v936, %v1007
        %v1023 = vadd.f32 %v939, %v1009
        %v1024 = vadd.f32 %v942, %v1011
        %v1025 = vadd.f32 %v945, %v1013
        %v1026 = vadd.f32 %v948, %v1015
        %v1027 = vadd.f32 %v951, %v1017
        %v1028 = vadd.f32 %v954, %v1019
        %v1029 = vadd.f32 %v957, %v1021
        %v1030 = vsel %vm276, %v896, 0.0
        %v1031 = vsel %vm277, %v899, 0.0
        %v1032 = vsel %vm278, %v904, 0.0
        %v1033 = vsel %vm279, %v907, 0.0
        %v1034 = vsel %vm280, %v912, 0.0
        %v1035 = vsel %vm281, %v915, 0.0
        %v1036 = vsel %vm282, %v920, 0.0
        %v1037 = vsel %vm283, %v923, 0.0
        %v1038 = vsel %vm468, %v1030, 0.0
        %1039 = vadd.xlane.f32.xlu0 %v1038
        %v1040 = vpop.xlane.xlu0 %1039
        %v1041 = vsel %vm468, %v1031, 0.0
        %1042 = vadd.xlane.f32.xlu0 %v1041
        %v1043 = vpop.xlane.xlu0 %1042
        %v1044 = vsel %vm468, %v1032, 0.0
        %1045 = vadd.xlane.f32.xlu0 %v1044
        %v1046 = vpop.xlane.xlu0 %1045
        %v1047 = vsel %vm468, %v1033, 0.0
        %1048 = vadd.xlane.f32.xlu0 %v1047
        %v1049 = vpop.xlane.xlu0 %1048
        %v1050 = vsel %vm468, %v1034, 0.0
        %1051 = vadd.xlane.f32.xlu0 %v1050
        %v1052 = vpop.xlane.xlu0 %1051
        %v1053 = vsel %vm468, %v1035, 0.0
        %1054 = vadd.xlane.f32.xlu0 %v1053
        %v1055 = vpop.xlane.xlu0 %1054
        %v1056 = vsel %vm468, %v1036, 0.0
        %1057 = vadd.xlane.f32.xlu0 %v1056
        %v1058 = vpop.xlane.xlu0 %1057
        %v1059 = vsel %vm468, %v1037, 0.0
        %1060 = vadd.xlane.f32.xlu0 %v1059
        %v1061 = vpop.xlane.xlu0 %1060
        %v1062 = vsub.f32 %v1022, %v1040
        %v1063 = vsub.f32 %v1023, %v1043
        %v1064 = vsub.f32 %v1024, %v1046
        %v1065 = vsub.f32 %v1025, %v1049
        %v1066 = vsub.f32 %v1026, %v1052
        %v1067 = vsub.f32 %v1027, %v1055
        %v1068 = vsub.f32 %v1028, %v1058
        %v1069 = vsub.f32 %v1029, %v1061
        %v1070 = vmul.f32 %v1062, %v234
        %v1071 = vmul.f32 %v1063, %v235
        %v1072 = vmul.f32 %v1064, %v236
        %v1073 = vmul.f32 %v1065, %v237
        %v1074 = vmul.f32 %v1066, %v238
        %v1075 = vmul.f32 %v1067, %v239
        %v1076 = vmul.f32 %v1068, %v240
        %v1077 = vmul.f32 %v1069, %v241
        %v1078 = vld [vmem:[#allocation2] sm:$0x1]
        %vm1079 = vcmask 31768
        %v1080 = vsel %vm1079, %v1070, 0.0
        %v1081 = vsel %vm1079, %v1071, 0.0
        %v1082 = vadd.f32 %v1080, %v1081
        %v1083 = vsel %vm1079, %v1072, 0.0
        %v1084 = vadd.f32 %v1082, %v1083
        %v1085 = vsel %vm1079, %v1073, 0.0
        %v1086 = vadd.f32 %v1084, %v1085
        %v1087 = vsel %vm1079, %v1074, 0.0
        %v1088 = vadd.f32 %v1086, %v1087
        %v1089 = vsel %vm1079, %v1075, 0.0
        %v1090 = vadd.f32 %v1088, %v1089
        %v1091 = vsel %vm1079, %v1076, 0.0
        %v1092 = vadd.f32 %v1090, %v1091
        %v1093 = vsel %vm1079, %v1077, 0.0
        %v1094 = vadd.f32 %v1092, %v1093
        %v1095 = vrot.slane %v1094, 4
        %v1096 = vadd.f32 %v1094, %v1095
        %v1097 = vrot.slane %v1096, 2
        %v1098 = vadd.f32 %v1096, %v1097
        %v1099 = vrot.slane %v1098, 1
        %v1100 = vadd.f32 %v1098, %v1099
        %v1103 = vunpack.c.l.s4 1966171168
        %v1104 = vunpack.c.0.s8 %v1103
        %v1105 = vlaneseq
        %v1106 = vshrl.u32 %v1105, 7
        %v1107 = vsub.s32 %v1104, %v1106
        %v1108 = vrot.slane %v1100, %v1107
        %v1110 = vunpack.c.l.s4 1966171168
        %v1111 = vunpack.c.0.s8 %v1110
        %v1112 = vlaneseq
        %v1113 = vshrl.u32 %v1112, 7
        %v1114 = vsub.s32 %v1111, %v1113
        %v1115 = vrot.slane %v1108, %v1114
        %1116 = vrot.lane.b32.xlu0 %v1115, 125
        %v1117 = vpop.permute.xlu0 %1116
        %v1119 = vadd.f32 %v1078, %v1117
        %vm1120 = vcmask 0
        %1121 = vst.msk [vmem:[#allocation2] sm:$0x1] %vm1120, %v1119
        %s1122 = smul.u32 8, %s18
        %p1123 = scmp.lt.s32.totalorder %s1122, 15
        %s1124 = scalar_select %p1123, %s1122, 15
        %s1125 = smul.addr %s1124, 8
        %s1126 = scalar_lea.vmem %s4, %s1125
        // Predicated region
        $region41: #{kcat_diffuser_forward.1} parent=35 // pred_check
          %p1127 = pneg %p125
        $region42: #{kcat_diffuser_forward.1} parent=35 // pred_check_branch
          %1129 = sbr.rel (%p1127) target = $region44
        $region43: #{kcat_diffuser_forward.1} parent=35 // pred_region
          %s1130 = smul.u32 8, %s18
        $region44: #{kcat_diffuser_forward.1} parent=35 // pred_fallthru
          _
        // Predicated region
        $region45: #{kcat_diffuser_forward.1} parent=35 // pred_check
          %p1131 = pneg %p146
        $region46: #{kcat_diffuser_forward.1} parent=35 // pred_check_branch
          %1133 = sbr.rel (%p1131) target = $region48
        $region47: #{kcat_diffuser_forward.1} parent=35 // pred_region
          %s1135 = ssub.s32 16, 16
          %1136 = vsyncadd [#allocation3], %s1135
          %s1138 = sshll.u32 [#allocation2], 4
          %s1139 = int_to_ptr.vmem [resolvable:$true] %s1138
          %1141 = dma.vmem_to_hbm [thread:$0]  %s1139, 16, %s5, [#allocation3]
        $region48: #{kcat_diffuser_forward.1} parent=35 // pred_fallthru
          _
        // Predicated region
        $region49: #{kcat_diffuser_forward.1} parent=35 // pred_check
          %p1142 = pneg %p146
        $region50: #{kcat_diffuser_forward.1} parent=35 // pred_check_branch
          %1144 = sbr.rel (%p1142) target = $region52
        $region51: #{kcat_diffuser_forward.1} parent=35 // pred_region
          %1145 = dma.done [#allocation3], 16
        $region52: #{kcat_diffuser_forward.1} parent=35 // pred_fallthru
          _
      $region36: #{kcat_diffuser_forward.1} parent=5 // pred_fallthru
        _
      %p1146 = scmp.le.s32.totalorder 2, %s13
      // Predicated region
      $region53: #{kcat_diffuser_forward.1} parent=5 // pred_check
        %p1147 = pneg %p1146
      $region54: #{kcat_diffuser_forward.1} parent=5 // pred_check_branch
        %1149 = sbr.rel (%p1147) target = $region56
      $region55: #{kcat_diffuser_forward.1} parent=5 // pred_region
        %s1150 = ssub.s32 %s13, 2
        // Predicated region
        $region57: #{kcat_diffuser_forward.1} parent=55 // pred_check
          %p1151 = pneg %p131
        $region58: #{kcat_diffuser_forward.1} parent=55 // pred_check_branch
          %1153 = sbr.rel (%p1151) target = $region60
        $region59: #{kcat_diffuser_forward.1} parent=55 // pred_region
          %s1154 = smul.u32 8, %s19
          %p1155 = scmp.lt.s32.totalorder %s1154, 15
          %s1156 = scalar_select %p1155, %s1154, 15
          %s1157 = smul.addr %s1156, 8
          %s1158 = scalar_lea.vmem %s4, %s1157
        $region60: #{kcat_diffuser_forward.1} parent=55 // pred_fallthru
          _
      $region56: #{kcat_diffuser_forward.1} parent=5 // pred_fallthru
        _
    $region6: #{kcat_diffuser_forward.1} parent=1 // loop_footer
      %s17 = sadd.s32 1, %s13
    $region7: #{kcat_diffuser_forward.1} parent=1 // loop_footer_branch
      %12 = sbr.rel target = $region3
    $region8: #{kcat_diffuser_forward.1} parent=1 // loop_exit
      _
    %1159 = vsyncpa [#allocation3], 1
    %s1160 = scalar_lea.sflag [#allocation3], 1
    %1161 = vsyncpa %s1160, 1

</llo_original>
